<compile_context>
chip_gen: v7x
topology: tpu7x:2x2x1
jax: 0.10.0
libtpu: 0.0.40
codegen_flags: <defaults>
</compile_context>

<pallas_src>
import jax
import jax.numpy as jnp
from jax.experimental import pallas as pl
from jax.experimental.pallas import tpu as pltpu

PAD_ID = 1          # RoBERTa <pad> token id
SAFE_CODE = 0       # label code meaning 'safe'


def entail_kernel(raw_ref, len_ref, ids_ref, mask_ref):
    # raw_ref:  (TB, L) int32  -- raw (un-padded) token ids, rows = (sample, hyp)
    # len_ref:  (TB, 1) int32  -- valid token count per row
    # ids_ref:  (TB, L) int32  -- padded input_ids out
    # mask_ref: (TB, L) int8   -- attention mask out
    raw = raw_ref[...]
    lens = len_ref[...]                                       # (TB, 1)
    pos = jax.lax.broadcasted_iota(jnp.int32, raw.shape, 1)   # position index
    valid = pos < lens                                        # broadcast over L

    # encode_plus(..., padding='max_length', truncation=True) semantics:
    ids_ref[...] = jnp.where(valid, raw, jnp.int32(PAD_ID))
    mask_ref[...] = valid.astype(jnp.int8)


def _round_up(x, m):
    return ((x + m - 1) // m) * m


def _vmem_block_bytes(tb, L):
    """Double-buffered VMEM footprint of one grid step."""
    raw_in = tb * L * 4          # int32 raw ids
    ids_out = tb * L * 4         # int32 padded ids
    mask_out = tb * L * 1        # int8 mask
    lens_in = tb * 128 * 4       # (TB,1) int32 is lane-padded to 128 in VMEM
    return 2 * (raw_in + ids_out + mask_out + lens_in)


def _hw_tiling():
    """(max row tile, VMEM budget bytes) per TPU generation."""
    kind = ""
    try:
        kind = jax.devices()[0].device_kind.lower()
    except Exception:  # pragma: no cover - defensive only
        pass
    if "v7" in kind:                       # 64 MiB physical VMEM, 3.2 TB/s HBM
        return 8192, 40 * 1024 * 1024
    if "v6" in kind:                       # 128 MiB physical, 32 MiB scoped default
        return 4096, 28 * 1024 * 1024
    return 2048, 14 * 1024 * 1024          # v5e & older: 16 MiB scoped default


def features_entail_forward(raw_ids, lengths, label_codes, *,
                            min_kernel_rows=512, alias_raw_to_ids=False):
    """Returns (ids, masks, labels_int) mirroring features_Entail.forward.

    raw_ids:     (B, 2, L) int token ids (un-padded beyond `lengths`)
    lengths:     (B, 2)    valid token counts
    label_codes: (B,)      0 == 'safe', anything else == unsafe
    """
    B, C, L = raw_ids.shape
    rows = B * C

    # Label mapping: 'safe' -> 0, otherwise -> 1 (scalar metadata; done in XLA).
    labels = jnp.where(label_codes.astype(jnp.int32) == SAFE_CODE, 0, 1
                       ).astype(jnp.int32)

    # Flattened (B*2, L) layout: L stays the lane dim, sublane dim is dense.
    raw_flat = raw_ids.reshape(rows, L).astype(jnp.int32)
    # Clamp to L: encode_plus truncates; avoids an un-truncated all-ones mask.
    len_flat = jnp.minimum(lengths.reshape(rows, 1).astype(jnp.int32),
                           jnp.int32(L))

    # Fast path: tiny batches (per-call/pipeline overhead dominates ~KBs of
    # work) or a non-multiple-of-128 max_length (would force masked partial
    # stores).  XLA fuses these elementwise ops for free.
    if rows < min_kernel_rows or L % 128 != 0:
        pos = jax.lax.broadcasted_iota(jnp.int32, (rows, L), 1)
        valid = pos < len_flat
        ids_flat = jnp.where(valid, raw_flat, jnp.int32(PAD_ID))
        masks_flat = valid.astype(jnp.int8)
        return (ids_flat.reshape(B, C, L), masks_flat.reshape(B, C, L), labels)

    # --- Row-tile selection (per generation, VMEM-budgeted, >=2 grid steps) ---
    tb_max, vmem_budget = _hw_tiling()
    tb = min(tb_max, max(512, _round_up(pl.cdiv(rows, 2), 512)))
    while tb > 512 and _vmem_block_bytes(tb, L) > vmem_budget:
        tb //= 2
    grid = (pl.cdiv(rows, tb),)          # ragged last block handled by Pallas

    bytes_accessed = (rows * L * 4       # read raw ids
                      + rows * 4         # read lengths
                      + rows * L * 4     # write padded ids
                      + rows * L * 1)    # write int8 mask

    ids_flat, masks_flat = pl.pallas_call(
        entail_kernel,
        out_shape=(
            jax.ShapeDtypeStruct((rows, L), jnp.int32),
            jax.ShapeDtypeStruct((rows, L), jnp.int8),
        ),
        grid=grid,
        in_specs=[
            pl.BlockSpec((tb, L), lambda i: (i, 0)),
            pl.BlockSpec((tb, 1), lambda i: (i, 0)),
        ],
        out_specs=(
            pl.BlockSpec((tb, L), lambda i: (i, 0)),
            pl.BlockSpec((tb, L), lambda i: (i, 0)),
        ),
        compiler_params=pltpu.CompilerParams(
            dimension_semantics=("parallel",),
            vmem_limit_bytes=int(_vmem_block_bytes(tb, L)) + (4 << 20)),
        cost_estimate=pl.CostEstimate(
            flops=rows * L, transcendentals=0,
            bytes_accessed=bytes_accessed),
        # Only alias when the caller donates raw_ids; otherwise XLA would add
        # a defensive copy and *increase* HBM traffic.
        input_output_aliases=({0: 0} if alias_raw_to_ids else {}),
    )(raw_flat, len_flat)

    return ids_flat.reshape(B, C, L), masks_flat.reshape(B, C, L), labels


def _reference(raw_ids, lengths, label_codes):
    """Pure-JAX reference of the numeric tail (for correctness checks)."""
    B, C, L = raw_ids.shape
    pos = jnp.arange(L, dtype=jnp.int32)[None, None, :]
    lens = jnp.minimum(lengths.astype(jnp.int32), L)[..., None]
    valid = pos < lens
    ids = jnp.where(valid, raw_ids.astype(jnp.int32), jnp.int32(PAD_ID))
    masks = valid.astype(jnp.int8)
    labels = jnp.where(label_codes.astype(jnp.int32) == SAFE_CODE, 0, 1
                       ).astype(jnp.int32)
    return ids, masks, labels


if __name__ == "__main__":
    key = jax.random.PRNGKey(0)
    C, L = 2, 128              # hypotheses ('safe'/'unsafe'), max_length
    VOCAB = 50265              # RoBERTa vocab size

    # ---- Case 1: tiny batch (matches the module's typical call; fast path) --
    B1 = 2
    k1, k2, k3, k4, _ = jax.random.split(key, 5)
    raw1 = jax.random.randint(k1, (B1, C, L), minval=3, maxval=VOCAB,
                              dtype=jnp.int32)
    len1 = jax.random.randint(k2, (B1, C), minval=4, maxval=L, dtype=jnp.int32)
    lab1 = jnp.array([0, 1], dtype=jnp.int32)   # sample 0 safe, sample 1 unsafe

    ids1, masks1, labels1 = features_entail_forward(raw1, len1, lab1)
    jax.block_until_ready((ids1, masks1, labels1))
    r_ids1, r_masks1, r_lab1 = _reference(raw1, len1, lab1)
    assert ids1.shape == (B1, C, L) and masks1.shape == (B1, C, L)
    assert ids1.dtype == jnp.int32 and masks1.dtype == jnp.int8
    assert jnp.array_equal(ids1, r_ids1) and jnp.array_equal(masks1, r_masks1)
    assert jnp.array_equal(labels1, r_lab1)
    assert labels1[0] == 0 and labels1[1] == 1
    assert jnp.all(masks1.astype(jnp.int32).sum(-1) == jnp.minimum(len1, L))

    # ---- Case 2: larger batch to exercise the Pallas kernel path -----------
    # rows = 576 -> TB = 512, grid = (2,): one full block + one ragged block.
    B2 = 288
    raw2 = jax.random.randint(k3, (B2, C, L), minval=3, maxval=VOCAB,
                              dtype=jnp.int32)
    len2 = jax.random.randint(k4, (B2, C), minval=1, maxval=L, dtype=jnp.int32)
    lab2 = (jnp.arange(B2, dtype=jnp.int32) % 3)    # 0 -> safe, 1/2 -> unsafe

    ids2, masks2, labels2 = features_entail_forward(raw2, len2, lab2)
    jax.block_until_ready((ids2, masks2, labels2))
    r_ids2, r_masks2, r_lab2 = _reference(raw2, len2, lab2)
    assert ids2.shape == (B2, C, L) and masks2.shape == (B2, C, L)
    assert ids2.dtype == jnp.int32 and masks2.dtype == jnp.int8
    assert jnp.array_equal(ids2, r_ids2)
    assert jnp.array_equal(masks2, r_masks2)
    assert jnp.array_equal(labels2, r_lab2)
    assert jnp.all(jnp.where(masks2 == 0, ids2, PAD_ID) == PAD_ID)

    print("KERNEL_OK")
</pallas_src>

<mosaic_0001>
module attributes {stable_mosaic.version = 11 : i64} {
  func.func @entail_kernel(%arg0: i32, %arg1: memref<512x128xi32, #tpu.memory_space<vmem>>, %arg2: memref<512x1xi32, #tpu.memory_space<vmem>>, %arg3: memref<512x128xi32, #tpu.memory_space<vmem>>, %arg4: memref<512x128xi8, #tpu.memory_space<vmem>>) attributes {dimension_semantics = [#tpu.dimension_semantics<parallel>], iteration_bounds = array<i64: 2>, scalar_prefetch = 0 : i64, scratch_operands = 0 : i64, tpu.core_type = #tpu.core_type<tc>, window_params = [{transform_indices = @transform_0, window_bounds = array<i64: 512, 128>}, {transform_indices = @transform_1, window_bounds = array<i64: 512, 1>}, {transform_indices = @transform_2, window_bounds = array<i64: 512, 128>}, {transform_indices = @transform_3, window_bounds = array<i64: 512, 128>}]} {
    %c0 = arith.constant 0 : index
    %c0_0 = arith.constant 0 : index
    %0 = vector.load %arg1[%c0, %c0_0] : memref<512x128xi32, #tpu.memory_space<vmem>>, vector<512x128xi32>
    %c0_1 = arith.constant 0 : index
    %c0_2 = arith.constant 0 : index
    %1 = vector.load %arg2[%c0_1, %c0_2] : memref<512x1xi32, #tpu.memory_space<vmem>>, vector<512x1xi32>
    %2 = tpu.iota {dimensions = array<i32: 1>} : vector<512x128xi32>
    %3 = vector.broadcast %1 : vector<512x1xi32> to vector<512x128xi32>
    %4 = arith.cmpi slt, %2, %3 : vector<512x128xi32>
    %c1_i32 = arith.constant 1 : i32
    %5 = vector.broadcast %c1_i32 : i32 to vector<512x128xi32>
    %6 = arith.select %4, %0, %5 : vector<512x128xi1>, vector<512x128xi32>
    %c0_3 = arith.constant 0 : index
    %c0_4 = arith.constant 0 : index
    %7 = vector.load %arg3[%c0_3, %c0_4] : memref<512x128xi32, #tpu.memory_space<vmem>>, vector<512x128xi32>
    tpu.vector_store %arg3[%c0_3, %c0_4], %6 {strides = array<i32>} : memref<512x128xi32, #tpu.memory_space<vmem>>, vector<512x128xi32>,
    %8 = arith.extui %4 : vector<512x128xi1> to vector<512x128xi8>
    %c0_5 = arith.constant 0 : index
    %c0_6 = arith.constant 0 : index
    %9 = vector.load %arg4[%c0_5, %c0_6] : memref<512x128xi8, #tpu.memory_space<vmem>>, vector<512x128xi8>
    tpu.vector_store %arg4[%c0_5, %c0_6], %8 {strides = array<i32>} : memref<512x128xi8, #tpu.memory_space<vmem>>, vector<512x128xi8>,
    return
  }
  func.func @transform_0(%arg0: i32) -> (i32, i32) {
    %c0_i32 = arith.constant 0 : i32
    %c0_i32_0 = arith.constant 0 : i32
    return %arg0, %c0_i32 : i32, i32
  }
  func.func @transform_1(%arg0: i32) -> (i32, i32) {
    %c0_i32 = arith.constant 0 : i32
    %c0_i32_0 = arith.constant 0 : i32
    return %arg0, %c0_i32 : i32, i32
  }
  func.func @transform_2(%arg0: i32) -> (i32, i32) {
    %c0_i32 = arith.constant 0 : i32
    %c0_i32_0 = arith.constant 0 : i32
    return %arg0, %c0_i32 : i32, i32
  }
  func.func @transform_3(%arg0: i32) -> (i32, i32) {
    %c0_i32 = arith.constant 0 : i32
    %c0_i32_0 = arith.constant 0 : i32
    return %arg0, %c0_i32 : i32, i32
  }
}

</mosaic_0001>

<llo_original>
// kernel: tpu_custom_call.1
$region0: #{tpu_custom_call.1}
  #allocation0 [shape = 'u32[]', space=smem, size = 0x4, offset = 0x4, fixed_abs, tag = 'smem constant byte address 0x4 - core index']
  #allocation1 [shape = 'u32[144,128]{1,0:T(1,128)}', space=vmem, size = 0x12000, scoped, tag = 'internal scratch']
  %s0 = inlined_call_operand.vmem [shape: s32[576,128], index: 0, kind: input, shape index: {}]
  %s1 = inlined_call_operand.vmem [shape: s32[576,1], index: 1, kind: input, shape index: {}]
  %s2 = inlined_call_operand.hbm [shape: s32[576,128], index: 2, kind: output, shape index: {0}]
  %s3 = inlined_call_operand.hbm [shape: s8[576,128], index: 3, kind: output, shape index: {1}]
  %4 = xla_tuple %s2, %s3
  %s5 = sld [smem:[#allocation0]]
  $region49: #{tpu_custom_call.1} parent=0
    _
  %s7 = ssub.s32 1, %s5
  %s8 = scalar_select 0, %s7, %s5
  $region1: #{tpu_custom_call.1} parent=0
    #allocation2 [shape = 'u8[524288]{0}', space=vmem, size = 0x80000, scoped, tag = 'output window, operand 0']
    #allocation3 [shape = 's32[2]{0}', space=sflag, size = 0x8, scoped, tag = 'scoped memory for tpu_custom_call.1']
    #allocation4 [shape = 'u8[131072]{0}', space=vmem, size = 0x20000, scoped, tag = 'output window, operand 1']
    #allocation5 [shape = 's32[2]{0}', space=sflag, size = 0x8, scoped, tag = 'scoped memory for tpu_custom_call.1']
    %9 = vsyncpa [#allocation3], 0
    %s10 = scalar_lea.sflag [#allocation3], 1
    %11 = vsyncpa %s10, 0
    %12 = vsyncpa [#allocation5], 0
    %s13 = scalar_lea.sflag [#allocation5], 1
    %14 = vsyncpa %s13, 0
    loop: start=0, step=1, limit=4
    $region2: #{tpu_custom_call.1} parent=1 // loop_pre_header
      _
    $region3: #{tpu_custom_call.1} parent=1 // loop_header
      %s16 = sphi 0, %s20
      %p17 = scmp.ge.s32.totalorder %s16, 4
      %s26 = sphi 0, %s28
      %s29 = sphi 0, %s26
      %s30 = sphi 0, %s29
      %s46 = sphi 0, %s30
      %s52 = sphi 0, %s54
      %s55 = sphi 0, %s52
      %s56 = sphi 0, %s55
      %s72 = sphi 0, %s56
      %s78 = sphi 0, %s80
      %s81 = sphi 0, %s78
      %s82 = sphi 0, %s81
      %s98 = sphi 0, %s82
      %s104 = sphi 0, %s106
      %s107 = sphi 0, %s104
      %s108 = sphi 0, %s107
      %s124 = sphi 0, %s108
    $region4: #{tpu_custom_call.1} parent=1 // loop_header_branch
      %19 = sbr.rel (%p17) target = $region8
    $region5: #{tpu_custom_call.1} parent=1 // loop_body
      %s21 = ssub.s32 %s16, 1
      %s22 = ssub.s32 %s16, 2
      %s23 = sadd.s32 %s16, 1
      %s24 = ssub.s32 %s16, %s23
      %p25 = scmp.eq.s32.totalorder %s24, 0
      %s27 = sadd.s32 %s26, 1
      %s28 = scalar_select %p25, %s26, %s27
      %p31 = pneg %p25
      %p32 = scmp.eq.s32.totalorder %s16, 1
      %p33 = por %p31, %p32
      %p34 = scmp.ne.s32.totalorder %s26, %s29
      %p35 = scmp.eq.s32.totalorder %s16, 0
      %p36 = por %p34, %p35
      %p37 = scmp.ne.s32.totalorder %s26, %s29
      %p38 = scmp.eq.s32.totalorder %s21, 1
      %p39 = por %p37, %p38
      %p40 = scmp.ne.s32.totalorder %s29, %s30
      %p41 = scmp.eq.s32.totalorder %s21, 0
      %p42 = por %p40, %p41
      %p43 = scmp.ne.s32.totalorder %s29, %s30
      %p44 = scmp.eq.s32.totalorder %s22, 1
      %p45 = por %p43, %p44
      %p47 = scmp.ne.s32.totalorder %s30, %s46
      %p48 = scmp.eq.s32.totalorder %s22, 0
      %p49 = por %p47, %p48
      %s50 = ssub.s32 %s16, %s23
      %p51 = scmp.eq.s32.totalorder %s50, 0
      %s53 = sadd.s32 %s52, 1
      %s54 = scalar_select %p51, %s52, %s53
      %p57 = pneg %p51
      %p58 = scmp.eq.s32.totalorder %s16, 1
      %p59 = por %p57, %p58
      %p60 = scmp.ne.s32.totalorder %s52, %s55
      %p61 = scmp.eq.s32.totalorder %s16, 0
      %p62 = por %p60, %p61
      %p63 = scmp.ne.s32.totalorder %s52, %s55
      %p64 = scmp.eq.s32.totalorder %s21, 1
      %p65 = por %p63, %p64
      %p66 = scmp.ne.s32.totalorder %s55, %s56
      %p67 = scmp.eq.s32.totalorder %s21, 0
      %p68 = por %p66, %p67
      %p69 = scmp.ne.s32.totalorder %s55, %s56
      %p70 = scmp.eq.s32.totalorder %s22, 1
      %p71 = por %p69, %p70
      %p73 = scmp.ne.s32.totalorder %s56, %s72
      %p74 = scmp.eq.s32.totalorder %s22, 0
      %p75 = por %p73, %p74
      %s76 = ssub.s32 %s16, %s23
      %p77 = scmp.eq.s32.totalorder %s76, 0
      %s79 = sadd.s32 %s78, 1
      %s80 = scalar_select %p77, %s78, %s79
      %p83 = pneg %p77
      %p84 = scmp.eq.s32.totalorder %s16, 1
      %p85 = por %p83, %p84
      %p86 = scmp.ne.s32.totalorder %s78, %s81
      %p87 = scmp.eq.s32.totalorder %s16, 0
      %p88 = por %p86, %p87
      %p89 = scmp.ne.s32.totalorder %s78, %s81
      %p90 = scmp.eq.s32.totalorder %s21, 1
      %p91 = por %p89, %p90
      %p92 = scmp.ne.s32.totalorder %s81, %s82
      %p93 = scmp.eq.s32.totalorder %s21, 0
      %p94 = por %p92, %p93
      %p95 = scmp.ne.s32.totalorder %s81, %s82
      %p96 = scmp.eq.s32.totalorder %s22, 1
      %p97 = por %p95, %p96
      %p99 = scmp.ne.s32.totalorder %s82, %s98
      %p100 = scmp.eq.s32.totalorder %s22, 0
      %p101 = por %p99, %p100
      %s102 = ssub.s32 %s16, %s23
      %p103 = scmp.eq.s32.totalorder %s102, 0
      %s105 = sadd.s32 %s104, 1
      %s106 = scalar_select %p103, %s104, %s105
      %p109 = pneg %p103
      %p110 = scmp.eq.s32.totalorder %s16, 1
      %p111 = por %p109, %p110
      %p112 = scmp.ne.s32.totalorder %s104, %s107
      %p113 = scmp.eq.s32.totalorder %s16, 0
      %p114 = por %p112, %p113
      %p115 = scmp.ne.s32.totalorder %s104, %s107
      %p116 = scmp.eq.s32.totalorder %s21, 1
      %p117 = por %p115, %p116
      %p118 = scmp.ne.s32.totalorder %s107, %s108
      %p119 = scmp.eq.s32.totalorder %s21, 0
      %p120 = por %p118, %p119
      %p121 = scmp.ne.s32.totalorder %s107, %s108
      %p122 = scmp.eq.s32.totalorder %s22, 1
      %p123 = por %p121, %p122
      %p125 = scmp.ne.s32.totalorder %s108, %s124
      %p126 = scmp.eq.s32.totalorder %s22, 0
      %p127 = por %p125, %p126
      %p128 = scmp.le.s32.totalorder 1, %s16
      %p129 = scmp.lt.s32.totalorder %s16, 3
      %p130 = pnand %p128, %p129
      %p131 = pneg %p130
      // Predicated region
      $region9: #{tpu_custom_call.1} parent=5 // pred_check
        _
      $region10: #{tpu_custom_call.1} parent=5 // pred_check_branch
        %133 = sbr.rel (%p130) target = $region12
      $region11: #{tpu_custom_call.1} parent=5 // pred_region
        %s134 = ssub.s32 %s16, 1
      $region12: #{tpu_custom_call.1} parent=5 // pred_fallthru
        _
      %p135 = scmp.lt.s32.totalorder %s16, 2
      // Predicated region
      $region13: #{tpu_custom_call.1} parent=5 // pred_check
        %p136 = pneg %p135
      $region14: #{tpu_custom_call.1} parent=5 // pred_check_branch
        %138 = sbr.rel (%p136) target = $region16
      $region15: #{tpu_custom_call.1} parent=5 // pred_region
        // Predicated region
        $region17: #{tpu_custom_call.1} parent=15 // pred_check
          %p139 = pneg %p36
        $region18: #{tpu_custom_call.1} parent=15 // pred_check_branch
          %141 = sbr.rel (%p139) target = $region20
        $region19: #{tpu_custom_call.1} parent=15 // pred_region
          %s142 = smul.u32 64, %s16
          %s143 = ssub.s32 72, %s142
          %p144 = scmp.lt.s32.totalorder %s143, 64
          %s145 = scalar_select %p144, %s143, 64
          %s146 = smul.u32 128, %s145
          %p147 = scmp.lt.s32.totalorder %s142, 71
          %s148 = scalar_select %p147, %s142, 71
          %s149 = smul.addr %s148, 8
          %s150 = scalar_lea.vmem %s0, %s149
          %s151 = smul.u32 64, %s16
          %s152 = ssub.s32 72, %s151
          %p153 = scmp.lt.s32.totalorder %s152, 64
          %s154 = scalar_select %p153, %s152, 64
          %s155 = smul.u32 128, %s154
        $region20: #{tpu_custom_call.1} parent=15 // pred_fallthru
          _
        // Predicated region
        $region21: #{tpu_custom_call.1} parent=15 // pred_check
          %p156 = pneg %p62
        $region22: #{tpu_custom_call.1} parent=15 // pred_check_branch
          %158 = sbr.rel (%p156) target = $region24
        $region23: #{tpu_custom_call.1} parent=15 // pred_region
          %s159 = smul.u32 64, %s16
          %s160 = ssub.s32 72, %s159
          %p161 = scmp.lt.s32.totalorder %s160, 64
          %s162 = scalar_select %p161, %s160, 64
          %s163 = smul.u32 128, %s162
          %p164 = scmp.lt.s32.totalorder %s159, 71
          %s165 = scalar_select %p164, %s159, 71
          %s166 = smul.addr %s165, 8
          %s167 = scalar_lea.vmem %s1, %s166
          %s168 = smul.u32 64, %s16
          %s169 = ssub.s32 72, %s168
          %p170 = scmp.lt.s32.totalorder %s169, 64
          %s171 = scalar_select %p170, %s169, 64
          %s172 = smul.u32 128, %s171
        $region24: #{tpu_custom_call.1} parent=15 // pred_fallthru
          _
      $region16: #{tpu_custom_call.1} parent=5 // pred_fallthru
        _
      %p173 = scmp.le.s32.totalorder 1, %s16
      %p174 = scmp.lt.s32.totalorder %s16, 3
      %p175 = pnand %p173, %p174
      %p176 = pneg %p175
      // Predicated region
      $region25: #{tpu_custom_call.1} parent=5 // pred_check
        _
      $region26: #{tpu_custom_call.1} parent=5 // pred_check_branch
        %178 = sbr.rel (%p175) target = $region28
      $region27: #{tpu_custom_call.1} parent=5 // pred_region
        %s179 = ssub.s32 %s16, 1
        %s180 = smul.u32 64, %s21
        %s181 = ssub.s32 72, %s180
        %p182 = scmp.lt.s32.totalorder %s181, 64
        %s183 = scalar_select %p182, %s181, 64
        %s184 = smul.u32 128, %s183
        %p185 = scmp.lt.s32.totalorder %s180, 71
        %s186 = scalar_select %p185, %s180, 71
        %s187 = smul.addr %s186, 8
        %s188 = scalar_lea.vmem %s0, %s187
        %p189 = pneg %p42
        %p190 = pneg %p39
        %s191 = smul.u32 64, %s21
        %s192 = ssub.s32 72, %s191
        %p193 = scmp.lt.s32.totalorder %s192, 64
        %s194 = scalar_select %p193, %s192, 64
        %s195 = smul.u32 128, %s194
        %p196 = scmp.lt.s32.totalorder %s191, 71
        %s197 = scalar_select %p196, %s191, 71
        %s198 = smul.addr %s197, 8
        %s199 = scalar_lea.vmem %s1, %s198
        %p200 = pneg %p68
        %p201 = pneg %p65
        %p202 = pneg %p94
        %p203 = pneg %p91
        %s204 = sand.u32 %s81, 1
        %s205 = scalar_lea.sflag [#allocation3], %s204
        %s206 = sand.u32 %s81, 1
        %s207 = smul.addr %s206, 512
        %s208 = scalar_lea.vmem [#allocation2], %s207
        %p209 = pneg %p120
        %p210 = pneg %p117
        %s211 = sand.u32 %s107, 1
        %s212 = scalar_lea.sflag [#allocation5], %s211
        %s213 = sand.u32 %s107, 1
        %s214 = smul.addr %s213, 128
        %s215 = scalar_lea.vmem [#allocation4], %s214
        %s216 = smul.u32 64, %s21
        %s217 = ssub.s32 72, %s216
        %p218 = scmp.lt.s32.totalorder %s217, 64
        %s219 = scalar_select %p218, %s217, 64
        %s220 = smul.u32 128, %s219
        %p221 = scmp.lt.s32.totalorder %s216, 71
        %s222 = scalar_select %p221, %s216, 71
        %s223 = smul.addr %s222, 8
        %s224 = scalar_lea.vmem %s0, %s223
        %s225 = smul.u32 64, %s21
        %s226 = ssub.s32 72, %s225
        %p227 = scmp.lt.s32.totalorder %s226, 64
        %s228 = scalar_select %p227, %s226, 64
        %s229 = smul.u32 128, %s228
        %s230 = smul.u32 64, %s21
        %s231 = ssub.s32 72, %s230
        %p232 = scmp.lt.s32.totalorder %s231, 64
        %s233 = scalar_select %p232, %s231, 64
        %s234 = smul.u32 128, %s233
        %p235 = scmp.lt.s32.totalorder %s230, 71
        %s236 = scalar_select %p235, %s230, 71
        %s237 = smul.addr %s236, 8
        %s238 = scalar_lea.vmem %s1, %s237
        %s239 = smul.u32 64, %s21
        %s240 = ssub.s32 72, %s239
        %p241 = scmp.lt.s32.totalorder %s240, 64
        %s242 = scalar_select %p241, %s240, 64
        %s243 = smul.u32 128, %s242
        %s244 = smul.u32 64, %s21
        %s245 = ssub.s32 72, %s244
        %p246 = scmp.lt.s32.totalorder %s245, 64
        %s247 = scalar_select %p246, %s245, 64
        %s248 = smul.u32 128, %s247
        %s249 = smul.u32 16, %s21
        %s250 = ssub.s32 18, %s249
        %p251 = scmp.lt.s32.totalorder %s250, 16
        %s252 = scalar_select %p251, %s250, 16
        %s253 = smul.u32 128, %s252
        %v256 = vld [vmem:[%s224] sm:$0xff]
        %v257 = vld [vmem:[%s224 + $0x8] sm:$0xff]
        %v258 = vld [vmem:[%s224 + $0x10] sm:$0xff]
        %v259 = vld [vmem:[%s224 + $0x18] sm:$0xff]
        %v260 = vld [vmem:[%s224 + $0x20] sm:$0xff]
        %v261 = vld [vmem:[%s224 + $0x28] sm:$0xff]
        %v262 = vld [vmem:[%s224 + $0x30] sm:$0xff]
        %v263 = vld [vmem:[%s224 + $0x38] sm:$0xff]
        %v264 = vld [vmem:[%s224 + $0x40] sm:$0xff]
        %v265 = vld [vmem:[%s224 + $0x48] sm:$0xff]
        %v266 = vld [vmem:[%s224 + $0x50] sm:$0xff]
        %v267 = vld [vmem:[%s224 + $0x58] sm:$0xff]
        %v268 = vld [vmem:[%s224 + $0x60] sm:$0xff]
        %v269 = vld [vmem:[%s224 + $0x68] sm:$0xff]
        %v270 = vld [vmem:[%s224 + $0x70] sm:$0xff]
        %v271 = vld [vmem:[%s224 + $0x78] sm:$0xff]
        %v272 = vld [vmem:[%s224 + $0x80] sm:$0xff]
        %v273 = vld [vmem:[%s224 + $0x88] sm:$0xff]
        %v274 = vld [vmem:[%s224 + $0x90] sm:$0xff]
        %v275 = vld [vmem:[%s224 + $0x98] sm:$0xff]
        %v276 = vld [vmem:[%s224 + $0xa0] sm:$0xff]
        %v277 = vld [vmem:[%s224 + $0xa8] sm:$0xff]
        %v278 = vld [vmem:[%s224 + $0xb0] sm:$0xff]
        %v279 = vld [vmem:[%s224 + $0xb8] sm:$0xff]
        %v280 = vld [vmem:[%s224 + $0xc0] sm:$0xff]
        %v281 = vld [vmem:[%s224 + $0xc8] sm:$0xff]
        %v282 = vld [vmem:[%s224 + $0xd0] sm:$0xff]
        %v283 = vld [vmem:[%s224 + $0xd8] sm:$0xff]
        %v284 = vld [vmem:[%s224 + $0xe0] sm:$0xff]
        %v285 = vld [vmem:[%s224 + $0xe8] sm:$0xff]
        %v286 = vld [vmem:[%s224 + $0xf0] sm:$0xff]
        %v287 = vld [vmem:[%s224 + $0xf8] sm:$0xff]
        %v288 = vld [vmem:[%s224 + $0x100] sm:$0xff]
        %v289 = vld [vmem:[%s224 + $0x108] sm:$0xff]
        %v290 = vld [vmem:[%s224 + $0x110] sm:$0xff]
        %v291 = vld [vmem:[%s224 + $0x118] sm:$0xff]
        %v292 = vld [vmem:[%s224 + $0x120] sm:$0xff]
        %v293 = vld [vmem:[%s224 + $0x128] sm:$0xff]
        %v294 = vld [vmem:[%s224 + $0x130] sm:$0xff]
        %v295 = vld [vmem:[%s224 + $0x138] sm:$0xff]
        %v296 = vld [vmem:[%s224 + $0x140] sm:$0xff]
        %v297 = vld [vmem:[%s224 + $0x148] sm:$0xff]
        %v298 = vld [vmem:[%s224 + $0x150] sm:$0xff]
        %v299 = vld [vmem:[%s224 + $0x158] sm:$0xff]
        %v300 = vld [vmem:[%s224 + $0x160] sm:$0xff]
        %v301 = vld [vmem:[%s224 + $0x168] sm:$0xff]
        %v302 = vld [vmem:[%s224 + $0x170] sm:$0xff]
        %v303 = vld [vmem:[%s224 + $0x178] sm:$0xff]
        %v304 = vld [vmem:[%s224 + $0x180] sm:$0xff]
        %v305 = vld [vmem:[%s224 + $0x188] sm:$0xff]
        %v306 = vld [vmem:[%s224 + $0x190] sm:$0xff]
        %v307 = vld [vmem:[%s224 + $0x198] sm:$0xff]
        %v308 = vld [vmem:[%s224 + $0x1a0] sm:$0xff]
        %v309 = vld [vmem:[%s224 + $0x1a8] sm:$0xff]
        %v310 = vld [vmem:[%s224 + $0x1b0] sm:$0xff]
        %v311 = vld [vmem:[%s224 + $0x1b8] sm:$0xff]
        %v312 = vld [vmem:[%s224 + $0x1c0] sm:$0xff]
        %v313 = vld [vmem:[%s224 + $0x1c8] sm:$0xff]
        %v314 = vld [vmem:[%s224 + $0x1d0] sm:$0xff]
        %v315 = vld [vmem:[%s224 + $0x1d8] sm:$0xff]
        %v316 = vld [vmem:[%s224 + $0x1e0] sm:$0xff]
        %v317 = vld [vmem:[%s224 + $0x1e8] sm:$0xff]
        %v318 = vld [vmem:[%s224 + $0x1f0] sm:$0xff]
        %v319 = vld [vmem:[%s224 + $0x1f8] sm:$0xff]
        %v320 = vld [vmem:[%s238] sm:$0xff]
        %v321 = vld [vmem:[%s238 + $0x8] sm:$0xff]
        %v322 = vld [vmem:[%s238 + $0x10] sm:$0xff]
        %v323 = vld [vmem:[%s238 + $0x18] sm:$0xff]
        %v324 = vld [vmem:[%s238 + $0x20] sm:$0xff]
        %v325 = vld [vmem:[%s238 + $0x28] sm:$0xff]
        %v326 = vld [vmem:[%s238 + $0x30] sm:$0xff]
        %v327 = vld [vmem:[%s238 + $0x38] sm:$0xff]
        %v328 = vld [vmem:[%s238 + $0x40] sm:$0xff]
        %v329 = vld [vmem:[%s238 + $0x48] sm:$0xff]
        %v330 = vld [vmem:[%s238 + $0x50] sm:$0xff]
        %v331 = vld [vmem:[%s238 + $0x58] sm:$0xff]
        %v332 = vld [vmem:[%s238 + $0x60] sm:$0xff]
        %v333 = vld [vmem:[%s238 + $0x68] sm:$0xff]
        %v334 = vld [vmem:[%s238 + $0x70] sm:$0xff]
        %v335 = vld [vmem:[%s238 + $0x78] sm:$0xff]
        %v336 = vld [vmem:[%s238 + $0x80] sm:$0xff]
        %v337 = vld [vmem:[%s238 + $0x88] sm:$0xff]
        %v338 = vld [vmem:[%s238 + $0x90] sm:$0xff]
        %v339 = vld [vmem:[%s238 + $0x98] sm:$0xff]
        %v340 = vld [vmem:[%s238 + $0xa0] sm:$0xff]
        %v341 = vld [vmem:[%s238 + $0xa8] sm:$0xff]
        %v342 = vld [vmem:[%s238 + $0xb0] sm:$0xff]
        %v343 = vld [vmem:[%s238 + $0xb8] sm:$0xff]
        %v344 = vld [vmem:[%s238 + $0xc0] sm:$0xff]
        %v345 = vld [vmem:[%s238 + $0xc8] sm:$0xff]
        %v346 = vld [vmem:[%s238 + $0xd0] sm:$0xff]
        %v347 = vld [vmem:[%s238 + $0xd8] sm:$0xff]
        %v348 = vld [vmem:[%s238 + $0xe0] sm:$0xff]
        %v349 = vld [vmem:[%s238 + $0xe8] sm:$0xff]
        %v350 = vld [vmem:[%s238 + $0xf0] sm:$0xff]
        %v351 = vld [vmem:[%s238 + $0xf8] sm:$0xff]
        %v352 = vld [vmem:[%s238 + $0x100] sm:$0xff]
        %v353 = vld [vmem:[%s238 + $0x108] sm:$0xff]
        %v354 = vld [vmem:[%s238 + $0x110] sm:$0xff]
        %v355 = vld [vmem:[%s238 + $0x118] sm:$0xff]
        %v356 = vld [vmem:[%s238 + $0x120] sm:$0xff]
        %v357 = vld [vmem:[%s238 + $0x128] sm:$0xff]
        %v358 = vld [vmem:[%s238 + $0x130] sm:$0xff]
        %v359 = vld [vmem:[%s238 + $0x138] sm:$0xff]
        %v360 = vld [vmem:[%s238 + $0x140] sm:$0xff]
        %v361 = vld [vmem:[%s238 + $0x148] sm:$0xff]
        %v362 = vld [vmem:[%s238 + $0x150] sm:$0xff]
        %v363 = vld [vmem:[%s238 + $0x158] sm:$0xff]
        %v364 = vld [vmem:[%s238 + $0x160] sm:$0xff]
        %v365 = vld [vmem:[%s238 + $0x168] sm:$0xff]
        %v366 = vld [vmem:[%s238 + $0x170] sm:$0xff]
        %v367 = vld [vmem:[%s238 + $0x178] sm:$0xff]
        %v368 = vld [vmem:[%s238 + $0x180] sm:$0xff]
        %v369 = vld [vmem:[%s238 + $0x188] sm:$0xff]
        %v370 = vld [vmem:[%s238 + $0x190] sm:$0xff]
        %v371 = vld [vmem:[%s238 + $0x198] sm:$0xff]
        %v372 = vld [vmem:[%s238 + $0x1a0] sm:$0xff]
        %v373 = vld [vmem:[%s238 + $0x1a8] sm:$0xff]
        %v374 = vld [vmem:[%s238 + $0x1b0] sm:$0xff]
        %v375 = vld [vmem:[%s238 + $0x1b8] sm:$0xff]
        %v376 = vld [vmem:[%s238 + $0x1c0] sm:$0xff]
        %v377 = vld [vmem:[%s238 + $0x1c8] sm:$0xff]
        %v378 = vld [vmem:[%s238 + $0x1d0] sm:$0xff]
        %v379 = vld [vmem:[%s238 + $0x1d8] sm:$0xff]
        %v380 = vld [vmem:[%s238 + $0x1e0] sm:$0xff]
        %v381 = vld [vmem:[%s238 + $0x1e8] sm:$0xff]
        %v382 = vld [vmem:[%s238 + $0x1f0] sm:$0xff]
        %v383 = vld [vmem:[%s238 + $0x1f8] sm:$0xff]
        %v384 = vlaneseq
        %v385 = vand.u32 %v384, 127
        %386 = vset.pattern.permute.xlu0 0
        %387 = vperm.xlu0 %386, %v320
        %v388 = vpop.permute.xlu0 %387
        %389 = vset.pattern.permute.xlu0 0
        %390 = vperm.xlu0 %389, %v321
        %v391 = vpop.permute.xlu0 %390
        %392 = vset.pattern.permute.xlu0 0
        %393 = vperm.xlu0 %392, %v322
        %v394 = vpop.permute.xlu0 %393
        %395 = vset.pattern.permute.xlu0 0
        %396 = vperm.xlu0 %395, %v323
        %v397 = vpop.permute.xlu0 %396
        %398 = vset.pattern.permute.xlu0 0
        %399 = vperm.xlu0 %398, %v324
        %v400 = vpop.permute.xlu0 %399
        %401 = vset.pattern.permute.xlu0 0
        %402 = vperm.xlu0 %401, %v325
        %v403 = vpop.permute.xlu0 %402
        %404 = vset.pattern.permute.xlu0 0
        %405 = vperm.xlu0 %404, %v326
        %v406 = vpop.permute.xlu0 %405
        %407 = vset.pattern.permute.xlu0 0
        %408 = vperm.xlu0 %407, %v327
        %v409 = vpop.permute.xlu0 %408
        %410 = vset.pattern.permute.xlu0 0
        %411 = vperm.xlu0 %410, %v328
        %v412 = vpop.permute.xlu0 %411
        %413 = vset.pattern.permute.xlu0 0
        %414 = vperm.xlu0 %413, %v329
        %v415 = vpop.permute.xlu0 %414
        %416 = vset.pattern.permute.xlu0 0
        %417 = vperm.xlu0 %416, %v330
        %v418 = vpop.permute.xlu0 %417
        %419 = vset.pattern.permute.xlu0 0
        %420 = vperm.xlu0 %419, %v331
        %v421 = vpop.permute.xlu0 %420
        %422 = vset.pattern.permute.xlu0 0
        %423 = vperm.xlu0 %422, %v332
        %v424 = vpop.permute.xlu0 %423
        %425 = vset.pattern.permute.xlu0 0
        %426 = vperm.xlu0 %425, %v333
        %v427 = vpop.permute.xlu0 %426
        %428 = vset.pattern.permute.xlu0 0
        %429 = vperm.xlu0 %428, %v334
        %v430 = vpop.permute.xlu0 %429
        %431 = vset.pattern.permute.xlu0 0
        %432 = vperm.xlu0 %431, %v335
        %v433 = vpop.permute.xlu0 %432
        %434 = vset.pattern.permute.xlu0 0
        %435 = vperm.xlu0 %434, %v336
        %v436 = vpop.permute.xlu0 %435
        %437 = vset.pattern.permute.xlu0 0
        %438 = vperm.xlu0 %437, %v337
        %v439 = vpop.permute.xlu0 %438
        %440 = vset.pattern.permute.xlu0 0
        %441 = vperm.xlu0 %440, %v338
        %v442 = vpop.permute.xlu0 %441
        %443 = vset.pattern.permute.xlu0 0
        %444 = vperm.xlu0 %443, %v339
        %v445 = vpop.permute.xlu0 %444
        %446 = vset.pattern.permute.xlu0 0
        %447 = vperm.xlu0 %446, %v340
        %v448 = vpop.permute.xlu0 %447
        %449 = vset.pattern.permute.xlu0 0
        %450 = vperm.xlu0 %449, %v341
        %v451 = vpop.permute.xlu0 %450
        %452 = vset.pattern.permute.xlu0 0
        %453 = vperm.xlu0 %452, %v342
        %v454 = vpop.permute.xlu0 %453
        %455 = vset.pattern.permute.xlu0 0
        %456 = vperm.xlu0 %455, %v343
        %v457 = vpop.permute.xlu0 %456
        %458 = vset.pattern.permute.xlu0 0
        %459 = vperm.xlu0 %458, %v344
        %v460 = vpop.permute.xlu0 %459
        %461 = vset.pattern.permute.xlu0 0
        %462 = vperm.xlu0 %461, %v345
        %v463 = vpop.permute.xlu0 %462
        %464 = vset.pattern.permute.xlu0 0
        %465 = vperm.xlu0 %464, %v346
        %v466 = vpop.permute.xlu0 %465
        %467 = vset.pattern.permute.xlu0 0
        %468 = vperm.xlu0 %467, %v347
        %v469 = vpop.permute.xlu0 %468
        %470 = vset.pattern.permute.xlu0 0
        %471 = vperm.xlu0 %470, %v348
        %v472 = vpop.permute.xlu0 %471
        %473 = vset.pattern.permute.xlu0 0
        %474 = vperm.xlu0 %473, %v349
        %v475 = vpop.permute.xlu0 %474
        %476 = vset.pattern.permute.xlu0 0
        %477 = vperm.xlu0 %476, %v350
        %v478 = vpop.permute.xlu0 %477
        %479 = vset.pattern.permute.xlu0 0
        %480 = vperm.xlu0 %479, %v351
        %v481 = vpop.permute.xlu0 %480
        %482 = vset.pattern.permute.xlu0 0
        %483 = vperm.xlu0 %482, %v352
        %v484 = vpop.permute.xlu0 %483
        %485 = vset.pattern.permute.xlu0 0
        %486 = vperm.xlu0 %485, %v353
        %v487 = vpop.permute.xlu0 %486
        %488 = vset.pattern.permute.xlu0 0
        %489 = vperm.xlu0 %488, %v354
        %v490 = vpop.permute.xlu0 %489
        %491 = vset.pattern.permute.xlu0 0
        %492 = vperm.xlu0 %491, %v355
        %v493 = vpop.permute.xlu0 %492
        %494 = vset.pattern.permute.xlu0 0
        %495 = vperm.xlu0 %494, %v356
        %v496 = vpop.permute.xlu0 %495
        %497 = vset.pattern.permute.xlu0 0
        %498 = vperm.xlu0 %497, %v357
        %v499 = vpop.permute.xlu0 %498
        %500 = vset.pattern.permute.xlu0 0
        %501 = vperm.xlu0 %500, %v358
        %v502 = vpop.permute.xlu0 %501
        %503 = vset.pattern.permute.xlu0 0
        %504 = vperm.xlu0 %503, %v359
        %v505 = vpop.permute.xlu0 %504
        %506 = vset.pattern.permute.xlu0 0
        %507 = vperm.xlu0 %506, %v360
        %v508 = vpop.permute.xlu0 %507
        %509 = vset.pattern.permute.xlu0 0
        %510 = vperm.xlu0 %509, %v361
        %v511 = vpop.permute.xlu0 %510
        %512 = vset.pattern.permute.xlu0 0
        %513 = vperm.xlu0 %512, %v362
        %v514 = vpop.permute.xlu0 %513
        %515 = vset.pattern.permute.xlu0 0
        %516 = vperm.xlu0 %515, %v363
        %v517 = vpop.permute.xlu0 %516
        %518 = vset.pattern.permute.xlu0 0
        %519 = vperm.xlu0 %518, %v364
        %v520 = vpop.permute.xlu0 %519
        %521 = vset.pattern.permute.xlu0 0
        %522 = vperm.xlu0 %521, %v365
        %v523 = vpop.permute.xlu0 %522
        %524 = vset.pattern.permute.xlu0 0
        %525 = vperm.xlu0 %524, %v366
        %v526 = vpop.permute.xlu0 %525
        %527 = vset.pattern.permute.xlu0 0
        %528 = vperm.xlu0 %527, %v367
        %v529 = vpop.permute.xlu0 %528
        %530 = vset.pattern.permute.xlu0 0
        %531 = vperm.xlu0 %530, %v368
        %v532 = vpop.permute.xlu0 %531
        %533 = vset.pattern.permute.xlu0 0
        %534 = vperm.xlu0 %533, %v369
        %v535 = vpop.permute.xlu0 %534
        %536 = vset.pattern.permute.xlu0 0
        %537 = vperm.xlu0 %536, %v370
        %v538 = vpop.permute.xlu0 %537
        %539 = vset.pattern.permute.xlu0 0
        %540 = vperm.xlu0 %539, %v371
        %v541 = vpop.permute.xlu0 %540
        %542 = vset.pattern.permute.xlu0 0
        %543 = vperm.xlu0 %542, %v372
        %v544 = vpop.permute.xlu0 %543
        %545 = vset.pattern.permute.xlu0 0
        %546 = vperm.xlu0 %545, %v373
        %v547 = vpop.permute.xlu0 %546
        %548 = vset.pattern.permute.xlu0 0
        %549 = vperm.xlu0 %548, %v374
        %v550 = vpop.permute.xlu0 %549
        %551 = vset.pattern.permute.xlu0 0
        %552 = vperm.xlu0 %551, %v375
        %v553 = vpop.permute.xlu0 %552
        %554 = vset.pattern.permute.xlu0 0
        %555 = vperm.xlu0 %554, %v376
        %v556 = vpop.permute.xlu0 %555
        %557 = vset.pattern.permute.xlu0 0
        %558 = vperm.xlu0 %557, %v377
        %v559 = vpop.permute.xlu0 %558
        %560 = vset.pattern.permute.xlu0 0
        %561 = vperm.xlu0 %560, %v378
        %v562 = vpop.permute.xlu0 %561
        %563 = vset.pattern.permute.xlu0 0
        %564 = vperm.xlu0 %563, %v379
        %v565 = vpop.permute.xlu0 %564
        %566 = vset.pattern.permute.xlu0 0
        %567 = vperm.xlu0 %566, %v380
        %v568 = vpop.permute.xlu0 %567
        %569 = vset.pattern.permute.xlu0 0
        %570 = vperm.xlu0 %569, %v381
        %v571 = vpop.permute.xlu0 %570
        %572 = vset.pattern.permute.xlu0 0
        %573 = vperm.xlu0 %572, %v382
        %v574 = vpop.permute.xlu0 %573
        %575 = vset.pattern.permute.xlu0 0
        %576 = vperm.xlu0 %575, %v383
        %v577 = vpop.permute.xlu0 %576
        %vm578 = vcmp.lt.s32.totalorder %v385, %v388
        %vm579 = vcmp.lt.s32.totalorder %v385, %v391
        %vm580 = vcmp.lt.s32.totalorder %v385, %v394
        %vm581 = vcmp.lt.s32.totalorder %v385, %v397
        %vm582 = vcmp.lt.s32.totalorder %v385, %v400
        %vm583 = vcmp.lt.s32.totalorder %v385, %v403
        %vm584 = vcmp.lt.s32.totalorder %v385, %v406
        %vm585 = vcmp.lt.s32.totalorder %v385, %v409
        %vm586 = vcmp.lt.s32.totalorder %v385, %v412
        %vm587 = vcmp.lt.s32.totalorder %v385, %v415
        %vm588 = vcmp.lt.s32.totalorder %v385, %v418
        %vm589 = vcmp.lt.s32.totalorder %v385, %v421
        %vm590 = vcmp.lt.s32.totalorder %v385, %v424
        %vm591 = vcmp.lt.s32.totalorder %v385, %v427
        %vm592 = vcmp.lt.s32.totalorder %v385, %v430
        %vm593 = vcmp.lt.s32.totalorder %v385, %v433
        %vm594 = vcmp.lt.s32.totalorder %v385, %v436
        %vm595 = vcmp.lt.s32.totalorder %v385, %v439
        %vm596 = vcmp.lt.s32.totalorder %v385, %v442
        %vm597 = vcmp.lt.s32.totalorder %v385, %v445
        %vm598 = vcmp.lt.s32.totalorder %v385, %v448
        %vm599 = vcmp.lt.s32.totalorder %v385, %v451
        %vm600 = vcmp.lt.s32.totalorder %v385, %v454
        %vm601 = vcmp.lt.s32.totalorder %v385, %v457
        %vm602 = vcmp.lt.s32.totalorder %v385, %v460
        %vm603 = vcmp.lt.s32.totalorder %v385, %v463
        %vm604 = vcmp.lt.s32.totalorder %v385, %v466
        %vm605 = vcmp.lt.s32.totalorder %v385, %v469
        %vm606 = vcmp.lt.s32.totalorder %v385, %v472
        %vm607 = vcmp.lt.s32.totalorder %v385, %v475
        %vm608 = vcmp.lt.s32.totalorder %v385, %v478
        %vm609 = vcmp.lt.s32.totalorder %v385, %v481
        %vm610 = vcmp.lt.s32.totalorder %v385, %v484
        %vm611 = vcmp.lt.s32.totalorder %v385, %v487
        %vm612 = vcmp.lt.s32.totalorder %v385, %v490
        %vm613 = vcmp.lt.s32.totalorder %v385, %v493
        %vm614 = vcmp.lt.s32.totalorder %v385, %v496
        %vm615 = vcmp.lt.s32.totalorder %v385, %v499
        %vm616 = vcmp.lt.s32.totalorder %v385, %v502
        %vm617 = vcmp.lt.s32.totalorder %v385, %v505
        %vm618 = vcmp.lt.s32.totalorder %v385, %v508
        %vm619 = vcmp.lt.s32.totalorder %v385, %v511
        %vm620 = vcmp.lt.s32.totalorder %v385, %v514
        %vm621 = vcmp.lt.s32.totalorder %v385, %v517
        %vm622 = vcmp.lt.s32.totalorder %v385, %v520
        %vm623 = vcmp.lt.s32.totalorder %v385, %v523
        %vm624 = vcmp.lt.s32.totalorder %v385, %v526
        %vm625 = vcmp.lt.s32.totalorder %v385, %v529
        %vm626 = vcmp.lt.s32.totalorder %v385, %v532
        %vm627 = vcmp.lt.s32.totalorder %v385, %v535
        %vm628 = vcmp.lt.s32.totalorder %v385, %v538
        %vm629 = vcmp.lt.s32.totalorder %v385, %v541
        %vm630 = vcmp.lt.s32.totalorder %v385, %v544
        %vm631 = vcmp.lt.s32.totalorder %v385, %v547
        %vm632 = vcmp.lt.s32.totalorder %v385, %v550
        %vm633 = vcmp.lt.s32.totalorder %v385, %v553
        %vm634 = vcmp.lt.s32.totalorder %v385, %v556
        %vm635 = vcmp.lt.s32.totalorder %v385, %v559
        %vm636 = vcmp.lt.s32.totalorder %v385, %v562
        %vm637 = vcmp.lt.s32.totalorder %v385, %v565
        %vm638 = vcmp.lt.s32.totalorder %v385, %v568
        %vm639 = vcmp.lt.s32.totalorder %v385, %v571
        %vm640 = vcmp.lt.s32.totalorder %v385, %v574
        %vm641 = vcmp.lt.s32.totalorder %v385, %v577
        %v642 = vsel %vm578, %v256, 1
        %v643 = vsel %vm579, %v257, 1
        %v644 = vsel %vm580, %v258, 1
        %v645 = vsel %vm581, %v259, 1
        %v646 = vsel %vm582, %v260, 1
        %v647 = vsel %vm583, %v261, 1
        %v648 = vsel %vm584, %v262, 1
        %v649 = vsel %vm585, %v263, 1
        %v650 = vsel %vm586, %v264, 1
        %v651 = vsel %vm587, %v265, 1
        %v652 = vsel %vm588, %v266, 1
        %v653 = vsel %vm589, %v267, 1
        %v654 = vsel %vm590, %v268, 1
        %v655 = vsel %vm591, %v269, 1
        %v656 = vsel %vm592, %v270, 1
        %v657 = vsel %vm593, %v271, 1
        %v658 = vsel %vm594, %v272, 1
        %v659 = vsel %vm595, %v273, 1
        %v660 = vsel %vm596, %v274, 1
        %v661 = vsel %vm597, %v275, 1
        %v662 = vsel %vm598, %v276, 1
        %v663 = vsel %vm599, %v277, 1
        %v664 = vsel %vm600, %v278, 1
        %v665 = vsel %vm601, %v279, 1
        %v666 = vsel %vm602, %v280, 1
        %v667 = vsel %vm603, %v281, 1
        %v668 = vsel %vm604, %v282, 1
        %v669 = vsel %vm605, %v283, 1
        %v670 = vsel %vm606, %v284, 1
        %v671 = vsel %vm607, %v285, 1
        %v672 = vsel %vm608, %v286, 1
        %v673 = vsel %vm609, %v287, 1
        %v674 = vsel %vm610, %v288, 1
        %v675 = vsel %vm611, %v289, 1
        %v676 = vsel %vm612, %v290, 1
        %v677 = vsel %vm613, %v291, 1
        %v678 = vsel %vm614, %v292, 1
        %v679 = vsel %vm615, %v293, 1
        %v680 = vsel %vm616, %v294, 1
        %v681 = vsel %vm617, %v295, 1
        %v682 = vsel %vm618, %v296, 1
        %v683 = vsel %vm619, %v297, 1
        %v684 = vsel %vm620, %v298, 1
        %v685 = vsel %vm621, %v299, 1
        %v686 = vsel %vm622, %v300, 1
        %v687 = vsel %vm623, %v301, 1
        %v688 = vsel %vm624, %v302, 1
        %v689 = vsel %vm625, %v303, 1
        %v690 = vsel %vm626, %v304, 1
        %v691 = vsel %vm627, %v305, 1
        %v692 = vsel %vm628, %v306, 1
        %v693 = vsel %vm629, %v307, 1
        %v694 = vsel %vm630, %v308, 1
        %v695 = vsel %vm631, %v309, 1
        %v696 = vsel %vm632, %v310, 1
        %v697 = vsel %vm633, %v311, 1
        %v698 = vsel %vm634, %v312, 1
        %v699 = vsel %vm635, %v313, 1
        %v700 = vsel %vm636, %v314, 1
        %v701 = vsel %vm637, %v315, 1
        %v702 = vsel %vm638, %v316, 1
        %v703 = vsel %vm639, %v317, 1
        %v704 = vsel %vm640, %v318, 1
        %v705 = vsel %vm641, %v319, 1
        %706 = vst [vmem:[%s208] sm:$0xff] %v642
        %707 = vst [vmem:[%s208 + $0x8] sm:$0xff] %v643
        %708 = vst [vmem:[%s208 + $0x10] sm:$0xff] %v644
        %709 = vst [vmem:[%s208 + $0x18] sm:$0xff] %v645
        %710 = vst [vmem:[%s208 + $0x20] sm:$0xff] %v646
        %711 = vst [vmem:[%s208 + $0x28] sm:$0xff] %v647
        %712 = vst [vmem:[%s208 + $0x30] sm:$0xff] %v648
        %713 = vst [vmem:[%s208 + $0x38] sm:$0xff] %v649
        %714 = vst [vmem:[%s208 + $0x40] sm:$0xff] %v650
        %715 = vst [vmem:[%s208 + $0x48] sm:$0xff] %v651
        %716 = vst [vmem:[%s208 + $0x50] sm:$0xff] %v652
        %717 = vst [vmem:[%s208 + $0x58] sm:$0xff] %v653
        %718 = vst [vmem:[%s208 + $0x60] sm:$0xff] %v654
        %719 = vst [vmem:[%s208 + $0x68] sm:$0xff] %v655
        %720 = vst [vmem:[%s208 + $0x70] sm:$0xff] %v656
        %721 = vst [vmem:[%s208 + $0x78] sm:$0xff] %v657
        %722 = vst [vmem:[%s208 + $0x80] sm:$0xff] %v658
        %723 = vst [vmem:[%s208 + $0x88] sm:$0xff] %v659
        %724 = vst [vmem:[%s208 + $0x90] sm:$0xff] %v660
        %725 = vst [vmem:[%s208 + $0x98] sm:$0xff] %v661
        %726 = vst [vmem:[%s208 + $0xa0] sm:$0xff] %v662
        %727 = vst [vmem:[%s208 + $0xa8] sm:$0xff] %v663
        %728 = vst [vmem:[%s208 + $0xb0] sm:$0xff] %v664
        %729 = vst [vmem:[%s208 + $0xb8] sm:$0xff] %v665
        %730 = vst [vmem:[%s208 + $0xc0] sm:$0xff] %v666
        %731 = vst [vmem:[%s208 + $0xc8] sm:$0xff] %v667
        %732 = vst [vmem:[%s208 + $0xd0] sm:$0xff] %v668
        %733 = vst [vmem:[%s208 + $0xd8] sm:$0xff] %v669
        %734 = vst [vmem:[%s208 + $0xe0] sm:$0xff] %v670
        %735 = vst [vmem:[%s208 + $0xe8] sm:$0xff] %v671
        %736 = vst [vmem:[%s208 + $0xf0] sm:$0xff] %v672
        %737 = vst [vmem:[%s208 + $0xf8] sm:$0xff] %v673
        %738 = vst [vmem:[%s208 + $0x100] sm:$0xff] %v674
        %739 = vst [vmem:[%s208 + $0x108] sm:$0xff] %v675
        %740 = vst [vmem:[%s208 + $0x110] sm:$0xff] %v676
        %741 = vst [vmem:[%s208 + $0x118] sm:$0xff] %v677
        %742 = vst [vmem:[%s208 + $0x120] sm:$0xff] %v678
        %743 = vst [vmem:[%s208 + $0x128] sm:$0xff] %v679
        %744 = vst [vmem:[%s208 + $0x130] sm:$0xff] %v680
        %745 = vst [vmem:[%s208 + $0x138] sm:$0xff] %v681
        %746 = vst [vmem:[%s208 + $0x140] sm:$0xff] %v682
        %747 = vst [vmem:[%s208 + $0x148] sm:$0xff] %v683
        %748 = vst [vmem:[%s208 + $0x150] sm:$0xff] %v684
        %749 = vst [vmem:[%s208 + $0x158] sm:$0xff] %v685
        %750 = vst [vmem:[%s208 + $0x160] sm:$0xff] %v686
        %751 = vst [vmem:[%s208 + $0x168] sm:$0xff] %v687
        %752 = vst [vmem:[%s208 + $0x170] sm:$0xff] %v688
        %753 = vst [vmem:[%s208 + $0x178] sm:$0xff] %v689
        %754 = vst [vmem:[%s208 + $0x180] sm:$0xff] %v690
        %755 = vst [vmem:[%s208 + $0x188] sm:$0xff] %v691
        %756 = vst [vmem:[%s208 + $0x190] sm:$0xff] %v692
        %757 = vst [vmem:[%s208 + $0x198] sm:$0xff] %v693
        %758 = vst [vmem:[%s208 + $0x1a0] sm:$0xff] %v694
        %759 = vst [vmem:[%s208 + $0x1a8] sm:$0xff] %v695
        %760 = vst [vmem:[%s208 + $0x1b0] sm:$0xff] %v696
        %761 = vst [vmem:[%s208 + $0x1b8] sm:$0xff] %v697
        %762 = vst [vmem:[%s208 + $0x1c0] sm:$0xff] %v698
        %763 = vst [vmem:[%s208 + $0x1c8] sm:$0xff] %v699
        %764 = vst [vmem:[%s208 + $0x1d0] sm:$0xff] %v700
        %765 = vst [vmem:[%s208 + $0x1d8] sm:$0xff] %v701
        %766 = vst [vmem:[%s208 + $0x1e0] sm:$0xff] %v702
        %767 = vst [vmem:[%s208 + $0x1e8] sm:$0xff] %v703
        %768 = vst [vmem:[%s208 + $0x1f0] sm:$0xff] %v704
        %769 = vst [vmem:[%s208 + $0x1f8] sm:$0xff] %v705
        %vm770 = vmpackc.low %vm579, %vm578
        %vm771 = vmpackc.low %vm581, %vm580
        %vm772 = vmpackc.even %vm771, %vm770
        %vm773 = vmpackc.low %vm583, %vm582
        %vm774 = vmpackc.low %vm585, %vm584
        %vm775 = vmpackc.even %vm774, %vm773
        %vm776 = vmpackc.low %vm587, %vm586
        %vm777 = vmpackc.low %vm589, %vm588
        %vm778 = vmpackc.even %vm777, %vm776
        %vm779 = vmpackc.low %vm591, %vm590
        %vm780 = vmpackc.low %vm593, %vm592
        %vm781 = vmpackc.even %vm780, %vm779
        %vm782 = vmpackc.low %vm595, %vm594
        %vm783 = vmpackc.low %vm597, %vm596
        %vm784 = vmpackc.even %vm783, %vm782
        %vm785 = vmpackc.low %vm599, %vm598
        %vm786 = vmpackc.low %vm601, %vm600
        %vm787 = vmpackc.even %vm786, %vm785
        %vm788 = vmpackc.low %vm603, %vm602
        %vm789 = vmpackc.low %vm605, %vm604
        %vm790 = vmpackc.even %vm789, %vm788
        %vm791 = vmpackc.low %vm607, %vm606
        %vm792 = vmpackc.low %vm609, %vm608
        %vm793 = vmpackc.even %vm792, %vm791
        %vm794 = vmpackc.low %vm611, %vm610
        %vm795 = vmpackc.low %vm613, %vm612
        %vm796 = vmpackc.even %vm795, %vm794
        %vm797 = vmpackc.low %vm615, %vm614
        %vm798 = vmpackc.low %vm617, %vm616
        %vm799 = vmpackc.even %vm798, %vm797
        %vm800 = vmpackc.low %vm619, %vm618
        %vm801 = vmpackc.low %vm621, %vm620
        %vm802 = vmpackc.even %vm801, %vm800
        %vm803 = vmpackc.low %vm623, %vm622
        %vm804 = vmpackc.low %vm625, %vm624
        %vm805 = vmpackc.even %vm804, %vm803
        %vm806 = vmpackc.low %vm627, %vm626
        %vm807 = vmpackc.low %vm629, %vm628
        %vm808 = vmpackc.even %vm807, %vm806
        %vm809 = vmpackc.low %vm631, %vm630
        %vm810 = vmpackc.low %vm633, %vm632
        %vm811 = vmpackc.even %vm810, %vm809
        %vm812 = vmpackc.low %vm635, %vm634
        %vm813 = vmpackc.low %vm637, %vm636
        %vm814 = vmpackc.even %vm813, %vm812
        %vm815 = vmpackc.low %vm639, %vm638
        %vm816 = vmpackc.low %vm641, %vm640
        %vm817 = vmpackc.even %vm816, %vm815
        %v818 = vsel %vm772, 16843009, 0
        %v819 = vsel %vm775, 16843009, 0
        %v820 = vsel %vm778, 16843009, 0
        %v821 = vsel %vm781, 16843009, 0
        %v822 = vsel %vm784, 16843009, 0
        %v823 = vsel %vm787, 16843009, 0
        %v824 = vsel %vm790, 16843009, 0
        %v825 = vsel %vm793, 16843009, 0
        %v826 = vsel %vm796, 16843009, 0
        %v827 = vsel %vm799, 16843009, 0
        %v828 = vsel %vm802, 16843009, 0
        %v829 = vsel %vm805, 16843009, 0
        %v830 = vsel %vm808, 16843009, 0
        %v831 = vsel %vm811, 16843009, 0
        %v832 = vsel %vm814, 16843009, 0
        %v833 = vsel %vm817, 16843009, 0
        %834 = vst [vmem:[%s215] sm:$0xff] %v818
        %835 = vst [vmem:[%s215 + $0x8] sm:$0xff] %v819
        %836 = vst [vmem:[%s215 + $0x10] sm:$0xff] %v820
        %837 = vst [vmem:[%s215 + $0x18] sm:$0xff] %v821
        %838 = vst [vmem:[%s215 + $0x20] sm:$0xff] %v822
        %839 = vst [vmem:[%s215 + $0x28] sm:$0xff] %v823
        %840 = vst [vmem:[%s215 + $0x30] sm:$0xff] %v824
        %841 = vst [vmem:[%s215 + $0x38] sm:$0xff] %v825
        %842 = vst [vmem:[%s215 + $0x40] sm:$0xff] %v826
        %843 = vst [vmem:[%s215 + $0x48] sm:$0xff] %v827
        %844 = vst [vmem:[%s215 + $0x50] sm:$0xff] %v828
        %845 = vst [vmem:[%s215 + $0x58] sm:$0xff] %v829
        %846 = vst [vmem:[%s215 + $0x60] sm:$0xff] %v830
        %847 = vst [vmem:[%s215 + $0x68] sm:$0xff] %v831
        %848 = vst [vmem:[%s215 + $0x70] sm:$0xff] %v832
        %849 = vst [vmem:[%s215 + $0x78] sm:$0xff] %v833
        %s850 = sand.u32 %s81, 1
        %s851 = scalar_lea.sflag [#allocation3], %s850
        %s852 = sand.u32 %s81, 1
        %s853 = smul.addr %s852, 512
        %s854 = scalar_lea.vmem [#allocation2], %s853
        %s855 = sand.u32 %s107, 1
        %s856 = scalar_lea.sflag [#allocation5], %s855
        %s857 = sand.u32 %s107, 1
        %s858 = smul.addr %s857, 128
        %s859 = scalar_lea.vmem [#allocation4], %s858
        // Predicated region
        $region29: #{tpu_custom_call.1} parent=27 // pred_check
          %p860 = pneg %p91
        $region30: #{tpu_custom_call.1} parent=27 // pred_check_branch
          %862 = sbr.rel (%p860) target = $region32
        $region31: #{tpu_custom_call.1} parent=27 // pred_region
          %s863 = smul.u32 64, %s21
          %s864 = ssub.s32 72, %s863
          %p865 = scmp.lt.s32.totalorder %s864, 64
          %s866 = scalar_select %p865, %s864, 64
          %s867 = smul.u32 128, %s866
          %s869 = ssub.s32 8192, %s867
          %870 = vsyncadd %s851, %s869
          %p871 = scmp.ne.s32.totalorder 0, %s867
          %s872 = smul.addr %s863, 128
          %s873 = scalar_lea.hbm %s2, %s872
          %s874 = smul.u32 8, %s866
          %s875 = sshll.u32 %s854, 4
          %s876 = int_to_ptr.vmem [resolvable:$true] %s875
          %s877 = sshll.u32 %s874, 4
          %881 = dma.vmem_to_hbm [thread:$0]  (%p871), %s876, %s877, %s873, %s851, 128, 128, 8
        $region32: #{tpu_custom_call.1} parent=27 // pred_fallthru
          _
        // Predicated region
        $region33: #{tpu_custom_call.1} parent=27 // pred_check
          %p882 = pneg %p117
        $region34: #{tpu_custom_call.1} parent=27 // pred_check_branch
          %884 = sbr.rel (%p882) target = $region36
        $region35: #{tpu_custom_call.1} parent=27 // pred_region
          %s885 = smul.u32 16, %s21
          %s886 = ssub.s32 18, %s885
          %p887 = scmp.lt.s32.totalorder %s886, 16
          %s888 = scalar_select %p887, %s886, 16
          %s889 = smul.u32 128, %s888
          %s891 = ssub.s32 2048, %s889
          %892 = vsyncadd %s856, %s891
          %p893 = scmp.ne.s32.totalorder 0, %s889
          %s894 = smul.addr %s885, 128
          %s895 = scalar_lea.hbm %s3, %s894
          %s896 = smul.u32 8, %s888
          %s897 = sshll.u32 %s859, 4
          %s898 = int_to_ptr.vmem [resolvable:$true] %s897
          %s899 = sshll.u32 %s896, 4
          %903 = dma.vmem_to_hbm [thread:$0]  (%p893), %s898, %s899, %s895, %s856, 128, 128, 8
        $region36: #{tpu_custom_call.1} parent=27 // pred_fallthru
          _
      $region28: #{tpu_custom_call.1} parent=5 // pred_fallthru
        _
      %p904 = scmp.le.s32.totalorder 2, %s16
      // Predicated region
      $region37: #{tpu_custom_call.1} parent=5 // pred_check
        %p905 = pneg %p904
      $region38: #{tpu_custom_call.1} parent=5 // pred_check_branch
        %907 = sbr.rel (%p905) target = $region40
      $region39: #{tpu_custom_call.1} parent=5 // pred_region
        %s908 = ssub.s32 %s16, 2
        // Predicated region
        $region41: #{tpu_custom_call.1} parent=39 // pred_check
          %p909 = pneg %p97
        $region42: #{tpu_custom_call.1} parent=39 // pred_check_branch
          %911 = sbr.rel (%p909) target = $region44
        $region43: #{tpu_custom_call.1} parent=39 // pred_region
          %s912 = sand.u32 %s82, 1
          %s913 = scalar_lea.sflag [#allocation3], %s912
          %s914 = sand.u32 %s82, 1
          %s915 = smul.addr %s914, 512
          %s916 = scalar_lea.vmem [#allocation2], %s915
          %917 = dma.done %s913, 8192
        $region44: #{tpu_custom_call.1} parent=39 // pred_fallthru
          _
        // Predicated region
        $region45: #{tpu_custom_call.1} parent=39 // pred_check
          %p918 = pneg %p123
        $region46: #{tpu_custom_call.1} parent=39 // pred_check_branch
          %920 = sbr.rel (%p918) target = $region48
        $region47: #{tpu_custom_call.1} parent=39 // pred_region
          %s921 = sand.u32 %s108, 1
          %s922 = scalar_lea.sflag [#allocation5], %s921
          %s923 = sand.u32 %s108, 1
          %s924 = smul.addr %s923, 128
          %s925 = scalar_lea.vmem [#allocation4], %s924
          %926 = dma.done %s922, 2048
        $region48: #{tpu_custom_call.1} parent=39 // pred_fallthru
          _
      $region40: #{tpu_custom_call.1} parent=5 // pred_fallthru
        _
    $region6: #{tpu_custom_call.1} parent=1 // loop_footer
      %s20 = sadd.s32 1, %s16
    $region7: #{tpu_custom_call.1} parent=1 // loop_footer_branch
      %15 = sbr.rel target = $region3
    $region8: #{tpu_custom_call.1} parent=1 // loop_exit
      _
    %927 = vsyncpa [#allocation3], 1
    %s928 = scalar_lea.sflag [#allocation3], 1
    %929 = vsyncpa %s928, 1
    %930 = vsyncpa [#allocation5], 1
    %s931 = scalar_lea.sflag [#allocation5], 1
    %932 = vsyncpa %s931, 1

</llo_original>
